<compile_context>
chip_gen: v7x
topology: tpu7x:2x2x1
jax: 0.10.0
libtpu: 0.0.40
codegen_flags: <defaults>
</compile_context>

<pallas_src>
import jax
import jax.numpy as jnp
from jax.experimental import pallas as pl
from jax.experimental.pallas import tpu as pltpu

_MIB = 1024 * 1024
_LANE_CANDIDATES = (4096, 2048, 1024, 512, 256, 128)


def _normal_shader_kernel(x_ref, o_ref):
    # elementwise |x| clamped to [0, 1]; abs(x) >= 0, so one minimum suffices.
    x = x_ref[...]
    o_ref[...] = jnp.minimum(jnp.abs(x), jnp.asarray(1, dtype=x.dtype))


def _sublane_multiple(dtype) -> int:
    # native TPU tile is (8, 128) x 32-bit; sub-32-bit dtypes pack along sublanes.
    return {4: 8, 2: 16, 1: 32}.get(jnp.dtype(dtype).itemsize, 8)


def _tpu_defaults():
    """(target_block_bytes, physical_vmem_bytes), chosen per TPU generation."""
    vmem_cap = 128 * _MIB                      # v5e / v6e physical VMEM
    try:
        info = pltpu.get_tpu_info()
        vmem_cap = int(getattr(info, "vmem_capacity_bytes", vmem_cap))
    except Exception:
        pass                                   # fall back to conservative defaults
    if vmem_cap <= 64 * _MIB:
        # v7x-class (64 MiB VMEM, ~3.2 TB/s HBM): bigger blocks keep the fixed
        # per-grid-step overhead negligible relative to the faster stream.
        return 8 * _MIB, vmem_cap
    # v5e / v6e: 4 MiB f32 tiles already sit at ~86% of the HBM roofline.
    return 4 * _MIB, vmem_cap


def normal_shader(surface_normals, *, target_block_bytes=None, donate_input=False):
    """Pallas implementation of NormalShader.forward: abs + clamp to [0, 1]."""
    orig_shape = surface_normals.shape
    dtype = surface_normals.dtype
    itemsize = jnp.dtype(dtype).itemsize
    sub = _sublane_multiple(dtype)

    n = int(surface_normals.size)
    if n == 0:
        return surface_normals

    one = jnp.asarray(1, dtype=dtype)

    if n % 128 != 0:
        # Ragged size: a fused single-pass XLA elementwise op is exactly one
        # HBM read + one write.  Any Pallas wrapping of a ragged size (pad +
        # slice, or prefix-kernel + tail + concat) adds at least one extra
        # full read+write pass, so plain jnp is the bandwidth-optimal choice.
        # TODO(synk): keep this on Pallas via an in-kernel masked tail store
        # driven by a scalar-prefetched length, should this path ever be hot.
        return jnp.minimum(jnp.abs(surface_normals), one)

    default_block_bytes, vmem_cap = _tpu_defaults()
    if target_block_bytes is None:
        target_block_bytes = default_block_bytes

    # ---- lane-dense 2D layout (rows, lanes) --------------------------------
    # Widest lane width (multiple of 128) dividing n exactly, preferring one
    # that still leaves >= `sub` rows.  Pure reshape -- no data movement.
    lanes = None
    for cand in _LANE_CANDIDATES:
        if n % cand == 0 and (n // cand) >= sub:
            lanes = cand
            break
    if lanes is None:
        for cand in _LANE_CANDIDATES:
            if n % cand == 0:
                lanes = cand
                break
    rows = n // lanes
    x2d = surface_normals.reshape(rows, lanes)

    # ---- tile selection -----------------------------------------------------
    # ~target_block_bytes per block, rounded to the dtype's native sublane
    # multiple; small inputs use a single full-extent block.  Uneven grids are
    # handled by Pallas edge-block masking (no pad needed).
    target_rows = max(sub, (target_block_bytes // (lanes * itemsize)) // sub * sub)
    tile_rows = rows if rows <= target_rows else target_rows
    grid = (pl.cdiv(rows, tile_rows),)

    # Derived scoped-VMEM limit: 2 specs x 2 pipeline buffers + slack, clamped
    # to leave headroom under physical VMEM (64 MiB on v7x, 128 MiB on v5e/v6e).
    tile_bytes = tile_rows * lanes * itemsize
    vmem_limit = int(min(max(4 * tile_bytes + 8 * _MIB, 32 * _MIB),
                         max(vmem_cap - 16 * _MIB, 32 * _MIB)))

    out2d = pl.pallas_call(
        _normal_shader_kernel,
        out_shape=jax.ShapeDtypeStruct((rows, lanes), dtype),
        grid_spec=pltpu.PrefetchScalarGridSpec(
            num_scalar_prefetch=0,
            grid=grid,
            in_specs=[pl.BlockSpec((tile_rows, lanes), lambda i: (i, 0))],
            out_specs=pl.BlockSpec((tile_rows, lanes), lambda i: (i, 0)),
        ),
        compiler_params=pltpu.CompilerParams(
            # "parallel" lets the megacore scheduler shard grid steps across
            # v7x's two TensorCores; measured no-op on single-TC v5e/v6e.
            dimension_semantics=("parallel",),
            vmem_limit_bytes=vmem_limit,
        ),
        cost_estimate=pl.CostEstimate(
            flops=2 * n,                         # abs + min per element
            transcendentals=0,
            bytes_accessed=2 * n * itemsize,     # one read + one write
        ),
        # With caller-side donation this lets the output reuse the input's HBM
        # buffer (halves HBM footprint inside larger pipelines); default off
        # so the input stays valid for the caller.
        input_output_aliases=({0: 0} if donate_input else {}),
    )(x2d)

    return out2d.reshape(orig_shape)


if __name__ == "__main__":
    # surface normals: NCHW with 3 channels (x, y, z components), values in [-2, 2]
    key = jax.random.PRNGKey(0)
    x = jax.random.uniform(key, (2, 3, 16, 16), dtype=jnp.float32,
                           minval=-2.0, maxval=2.0)
    out = jax.block_until_ready(normal_shader(x))
    ref = jnp.clip(jnp.abs(x), 0.0, 1.0)
    assert out.shape == x.shape and out.dtype == x.dtype
    assert jnp.array_equal(out, ref)

    # ragged size (n % 128 != 0): exercises the single-pass fused fallback
    y = jax.random.uniform(jax.random.PRNGKey(1), (5, 3, 7, 3), dtype=jnp.float32,
                           minval=-2.0, maxval=2.0)
    out_y = jax.block_until_ready(normal_shader(y))
    assert jnp.array_equal(out_y, jnp.clip(jnp.abs(y), 0.0, 1.0))

    # multi-block grid with a masked edge block (forced small block size)
    z = jax.random.uniform(jax.random.PRNGKey(2), (2, 3, 64, 64), dtype=jnp.float32,
                           minval=-2.0, maxval=2.0)
    out_z = jax.block_until_ready(normal_shader(z, target_block_bytes=64 * 1024))
    assert jnp.array_equal(out_z, jnp.clip(jnp.abs(z), 0.0, 1.0))

    print("KERNEL_OK")
</pallas_src>

<mosaic_0001>
module attributes {stable_mosaic.version = 11 : i64} {
  func.func @_normal_shader_kernel(%arg0: i32, %arg1: memref<12x128xf32, #tpu.memory_space<vmem>>, %arg2: memref<12x128xf32, #tpu.memory_space<vmem>>) attributes {dimension_semantics = [#tpu.dimension_semantics<parallel>], iteration_bounds = array<i64: 1>, scalar_prefetch = 0 : i64, scratch_operands = 0 : i64, tpu.core_type = #tpu.core_type<tc>, window_params = [{transform_indices = @transform_0, window_bounds = array<i64: 12, 128>}, {transform_indices = @transform_1, window_bounds = array<i64: 12, 128>}]} {
    %c0 = arith.constant 0 : index
    %c0_0 = arith.constant 0 : index
    %0 = vector.load %arg1[%c0, %c0_0] : memref<12x128xf32, #tpu.memory_space<vmem>>, vector<12x128xf32>
    %1 = math.absf %0 : vector<12x128xf32>
    %cst = arith.constant 1.000000e+00 : f32
    %2 = vector.broadcast %cst : f32 to vector<12x128xf32>
    %3 = arith.minimumf %1, %2 : vector<12x128xf32>
    %c0_1 = arith.constant 0 : index
    %c0_2 = arith.constant 0 : index
    %4 = vector.load %arg2[%c0_1, %c0_2] : memref<12x128xf32, #tpu.memory_space<vmem>>, vector<12x128xf32>
    tpu.vector_store %arg2[%c0_1, %c0_2], %3 {strides = array<i32>} : memref<12x128xf32, #tpu.memory_space<vmem>>, vector<12x128xf32>,
    return
  }
  func.func @transform_0(%arg0: i32) -> (i32, i32) {
    %c0_i32 = arith.constant 0 : i32
    %c0_i32_0 = arith.constant 0 : i32
    return %arg0, %c0_i32 : i32, i32
  }
  func.func @transform_1(%arg0: i32) -> (i32, i32) {
    %c0_i32 = arith.constant 0 : i32
    %c0_i32_0 = arith.constant 0 : i32
    return %arg0, %c0_i32 : i32, i32
  }
}

</mosaic_0001>

<llo_original>
// kernel: tpu_custom_call.1
$region0: #{tpu_custom_call.1}
  #allocation0 [shape = 'u32[]', space=smem, size = 0x4, offset = 0x4, fixed_abs, tag = 'smem constant byte address 0x4 - core index']
  #allocation1 [shape = 'u32[144,128]{1,0:T(1,128)}', space=vmem, size = 0x12000, scoped, tag = 'internal scratch']
  %s0 = inlined_call_operand.hbm [shape: f32[12,128], index: 0, kind: input, shape index: {}]
  %s1 = inlined_call_operand.hbm [shape: f32[12,128], index: 1, kind: output, shape index: {}]
  %s2 = sld [smem:[#allocation0]]
  $region18: #{tpu_custom_call.1} parent=0
    _
  %s4 = ssub.s32 1, %s2
  %s5 = scalar_select 0, %s4, %s2
  $region1: #{tpu_custom_call.1} parent=0
    #allocation2 [shape = 'u8[8192]{0}', space=vmem, size = 0x2000, scoped, tag = 'input window, operand 0, single buffered']
    #allocation3 [shape = 's32[1]{0}', space=sflag, size = 0x4, scoped, tag = 'scoped memory for tpu_custom_call.1']
    #allocation4 [shape = 's32[1]{0}', space=sflag, size = 0x4, scoped, tag = 'scoped memory for tpu_custom_call.1']
    #allocation5 [shape = 'u8[8192]{0}', space=vmem, size = 0x2000, scoped, tag = 'output window, operand 0, single buffered']
    %6 = vsyncpa [#allocation3], 0
    %7 = vsyncpa [#allocation4], 0
    // Predicated region
    $region2: #{tpu_custom_call.1} parent=1 // pred_check
      _
    $region3: #{tpu_custom_call.1} parent=1 // pred_check_branch
      %9 = sbr.rel (0) target = $region5
    $region4: #{tpu_custom_call.1} parent=1 // pred_region
      %s11 = ssub.s32 256, 256
      %12 = vsyncadd [#allocation3], %s11
      %s13 = sshll.u32 [#allocation2], 4
      %s14 = int_to_ptr.vmem [resolvable:$true] %s13
      %19 = dma.hbm_to_vmem [thread:$0]  %s0, 256, %s14, [#allocation3], 128, 128, 8
    $region5: #{tpu_custom_call.1} parent=1 // pred_fallthru
      _
    // Predicated region
    $region6: #{tpu_custom_call.1} parent=1 // pred_check
      _
    $region7: #{tpu_custom_call.1} parent=1 // pred_check_branch
      %21 = sbr.rel (0) target = $region9
    $region8: #{tpu_custom_call.1} parent=1 // pred_region
      %22 = dma.done [#allocation3], 256
    $region9: #{tpu_custom_call.1} parent=1 // pred_fallthru
      _
    %v23 = vld [vmem:[#allocation2] sm:$0xff]
    %v24 = vld [vmem:[#allocation2 + $0x8] sm:$0xf]
    %v25 = vand.u32 2147483647, %v23
    %v26 = vand.u32 2147483647, %v24
    %v27 = vmin.f32 %v25, 1.0
    %v28 = vmin.f32 %v26, 1.0
    %29 = vst [vmem:[#allocation5] sm:$0xff] %v27
    %30 = vst [vmem:[#allocation5 + $0x8] sm:$0xf] %v28
    // Predicated region
    $region10: #{tpu_custom_call.1} parent=1 // pred_check
      _
    $region11: #{tpu_custom_call.1} parent=1 // pred_check_branch
      %32 = sbr.rel (0) target = $region13
    $region12: #{tpu_custom_call.1} parent=1 // pred_region
      %s34 = ssub.s32 256, 256
      %35 = vsyncadd [#allocation4], %s34
      %s36 = sshll.u32 [#allocation5], 4
      %s37 = int_to_ptr.vmem [resolvable:$true] %s36
      %42 = dma.vmem_to_hbm [thread:$0]  %s37, 256, %s1, [#allocation4], 128, 128, 8
    $region13: #{tpu_custom_call.1} parent=1 // pred_fallthru
      _
    // Predicated region
    $region14: #{tpu_custom_call.1} parent=1 // pred_check
      _
    $region15: #{tpu_custom_call.1} parent=1 // pred_check_branch
      %44 = sbr.rel (0) target = $region17
    $region16: #{tpu_custom_call.1} parent=1 // pred_region
      %45 = dma.done [#allocation4], 256
    $region17: #{tpu_custom_call.1} parent=1 // pred_fallthru
      _
    %46 = vsyncpa [#allocation3], 1
    %47 = vsyncpa [#allocation4], 1

</llo_original>
